<compile_context>
chip_gen: v6e
topology: v6e:2x2x1
jax: 0.10.0
libtpu: 0.0.40
codegen_flags: <defaults>
</compile_context>

<pallas_src>
import functools
import math

import jax
import jax.numpy as jnp
from jax import lax
from jax.experimental import pallas as pl
from jax.experimental.pallas import tpu as pltpu

LANE_CHUNK = 512  # in-kernel sub-chunk width (lanes); multiple of 128


def mlp_kernel(x_ref, w1_ref, b1_ref, w2_ref, b2_ref, o_ref, *, chunk, elu_exp_dtype):
    """One batch tile, feature-major (batch on lanes):
       x_ref [3, BT], w1_ref [P, 3], b1_ref [P, 1], w2_ref [4, P], b2_ref [4, 1],
       o_ref [4, BT].  BT is a multiple of `chunk`."""
    w1 = w1_ref[...]
    b1 = b1_ref[...]
    w2 = w2_ref[...]
    b2 = b2_ref[...]
    n_chunks = o_ref.shape[1] // chunk

    def body(c, carry):
        j = pl.multiple_of(c * chunk, chunk)
        xc = x_ref[:, pl.ds(j, chunk)]                                    # [3, chunk]

        # fc1 on the MXU (K=3 padded internally by Mosaic).
        h = jnp.dot(w1, xc, preferred_element_type=jnp.float32) + b1     # [P, chunk]

        # ELU (alpha = 1).  exp goes to the EUP; optionally bf16 on v6e/v7x.
        if elu_exp_dtype is not None and elu_exp_dtype != jnp.float32:
            eh = jnp.exp(h.astype(elu_exp_dtype)).astype(jnp.float32)
        else:
            eh = jnp.exp(h)
        # TODO(synk): expm1 would be marginally more accurate for tiny |h| (error of
        # exp(h)-1 is ~1e-7 here); kept as exp-1 since expm1 lowering support is uncertain.
        h = jnp.where(h > 0, h, eh - 1.0)

        # fc2 on the MXU: [4, P] @ [P, chunk] -> [4, chunk].
        z = jnp.dot(w2, h, preferred_element_type=jnp.float32) + b2

        # Softmax over the 4 logit rows (PyTorch dim=1 == feature axis == sublanes).
        # Pairwise sublane-slice max/add stays on the VPU (no XLU reductions).
        m = jnp.maximum(jnp.maximum(z[0:1], z[1:2]), jnp.maximum(z[2:3], z[3:4]))
        e = jnp.exp(z - m)
        denom = (e[0:1] + e[1:2]) + (e[2:3] + e[3:4])                     # [1, chunk]
        r = pl.reciprocal(denom, approx=True)                             # EUP
        r = r * (2.0 - denom * r)                                         # 1 Newton step
        o_ref[:, pl.ds(j, chunk)] = e * r
        return carry

    lax.fori_loop(0, n_chunks, body, 0)


def _tile_plan(B, batch_tile):
    """Pick (batch tile, grid, padded batch): tiles are LANE_CHUNK-aligned, padding is
    minimized, and there are >=2 grid steps whenever there is enough work (v7x megacore)."""
    total_chunks = math.ceil(B / LANE_CHUNK)
    max_tile_chunks = max(1, batch_tile // LANE_CHUNK)
    grid = max(1, math.ceil(total_chunks / max_tile_chunks))
    if grid == 1 and total_chunks >= 2:
        grid = 2
    tile_chunks = math.ceil(total_chunks / grid)
    bt = tile_chunks * LANE_CHUNK
    return bt, grid, bt * grid


def net_forward_t(xt, w1, b1, w2, b2, *, batch_tile=32768, elu_exp_dtype=None):
    """Feature-major forward: xt [3, B] -> probs [4, B]. No host-side relayout passes
    (only edge padding when B is not a multiple of the tile)."""
    assert xt.shape[0] == 3
    B = xt.shape[1]
    P = w1.shape[0]
    bt, grid, B_pad = _tile_plan(B, batch_tile)

    xt = xt.astype(jnp.float32)
    if B_pad != B:
        xt = jnp.pad(xt, ((0, 0), (0, B_pad - B)))

    kernel = functools.partial(
        mlp_kernel, chunk=min(LANE_CHUNK, bt), elu_exp_dtype=elu_exp_dtype)

    out_t = pl.pallas_call(
        kernel,
        out_shape=jax.ShapeDtypeStruct((4, B_pad), jnp.float32),
        grid=(grid,),
        in_specs=[
            pl.BlockSpec((3, bt), lambda i: (0, i)),   # batch tile on lanes
            pl.BlockSpec((P, 3), lambda i: (0, 0)),    # weights/biases stay VMEM-resident
            pl.BlockSpec((P, 1), lambda i: (0, 0)),
            pl.BlockSpec((4, P), lambda i: (0, 0)),
            pl.BlockSpec((4, 1), lambda i: (0, 0)),
        ],
        out_specs=pl.BlockSpec((4, bt), lambda i: (0, i)),
        compiler_params=pltpu.CompilerParams(
            dimension_semantics=("parallel",)),  # shards batch tiles across TCs on v7x
        # VMEM @ bt=32768: x ~1 MiB + out ~1 MiB, double-buffered -> ~4 MiB total
        # (well under v5e's 16 MiB scoped default; intermediates live in vregs per chunk).
    )(xt,
      w1.astype(jnp.float32),
      b1.reshape(-1, 1).astype(jnp.float32),
      w2.astype(jnp.float32),
      b2.reshape(-1, 1).astype(jnp.float32))

    return out_t[:, :B] if B_pad != B else out_t


def net_forward(x, w1, b1, w2, b2, **kwargs):
    """PyTorch-parity forward: x [B, 3] -> probs [B, 4].
    Adds exactly one transpose each way; callers that can produce/consume feature-major
    layouts should use net_forward_t directly to avoid the relayout HBM traffic."""
    return net_forward_t(x.T, w1, b1, w2, b2, **kwargs).T


def reference_forward(x, w1, b1, w2, b2):
    h = x @ w1.T + b1
    h = jnp.where(h > 0, h, jnp.expm1(h))      # exact ELU
    z = h @ w2.T + b2
    return jax.nn.softmax(z, axis=1)


if __name__ == "__main__":
    n_perceptrons = 32
    key = jax.random.PRNGKey(0)
    kx, kw1, kb1, kw2, kb2, kx2 = jax.random.split(key, 6)

    # PyTorch-default-style init: U(-1/sqrt(fan_in), 1/sqrt(fan_in)).
    bound1 = 1.0 / jnp.sqrt(3.0)
    bound2 = 1.0 / jnp.sqrt(float(n_perceptrons))
    w1 = jax.random.uniform(kw1, (n_perceptrons, 3), jnp.float32, -bound1, bound1)
    b1 = jax.random.uniform(kb1, (n_perceptrons,), jnp.float32, -bound1, bound1)
    w2 = jax.random.uniform(kw2, (4, n_perceptrons), jnp.float32, -bound2, bound2)
    b2 = jax.random.uniform(kb2, (4,), jnp.float32, -bound2, bound2)

    # Small batch (single tile, padded up to one 512-lane chunk).
    batch = 8
    x = jax.random.normal(kx, (batch, 3), jnp.float32)
    out = jax.block_until_ready(net_forward(x, w1, b1, w2, b2))
    ref = reference_forward(x, w1, b1, w2, b2)
    assert out.shape == (batch, 4)
    # Tolerance covers DEFAULT-precision f32 MXU passes (both fc layers now on the MXU).
    assert jnp.allclose(out, ref, atol=5e-3, rtol=5e-3), "mismatch vs reference"
    assert jnp.allclose(jnp.sum(out, axis=1), 1.0, atol=1e-3), "softmax rows must sum to 1"

    # Non-multiple batch: exercises padding, a 2-step grid, and the in-kernel
    # multi-chunk loop (batch_tile=1024 -> 2 chunks per tile).
    batch2 = 1500
    x2 = jax.random.normal(kx2, (batch2, 3), jnp.float32)
    out2 = jax.block_until_ready(net_forward(x2, w1, b1, w2, b2, batch_tile=1024))
    ref2 = reference_forward(x2, w1, b1, w2, b2)
    assert out2.shape == (batch2, 4)
    assert jnp.allclose(out2, ref2, atol=5e-3, rtol=5e-3), "mismatch vs reference (padded)"
    assert jnp.allclose(jnp.sum(out2, axis=1), 1.0, atol=1e-3)

    # Relayout-free feature-major entry point.
    out2_t = jax.block_until_ready(net_forward_t(x2.T, w1, b1, w2, b2))
    assert out2_t.shape == (4, batch2)
    assert jnp.allclose(out2_t.T, ref2, atol=5e-3, rtol=5e-3), "mismatch (feature-major)"

    # bf16 ELU-exp path only on EUP-bf16-capable generations (v6e / v7x); never on v5e.
    kind = jax.devices()[0].device_kind.lower()
    if ("v6" in kind) or ("v7" in kind):
        out_bf = jax.block_until_ready(
            net_forward(x2, w1, b1, w2, b2, elu_exp_dtype=jnp.bfloat16))
        assert jnp.allclose(out_bf, ref2, atol=2e-2, rtol=2e-2), "mismatch (bf16 ELU exp)"

    print("KERNEL_OK")
</pallas_src>

<mosaic_0001>
module attributes {stable_mosaic.version = 11 : i64} {
  func.func @mlp_kernel(%arg0: i32, %arg1: memref<3x512xf32, #tpu.memory_space<vmem>>, %arg2: memref<32x3xf32, #tpu.memory_space<vmem>>, %arg3: memref<32x1xf32, #tpu.memory_space<vmem>>, %arg4: memref<4x32xf32, #tpu.memory_space<vmem>>, %arg5: memref<4x1xf32, #tpu.memory_space<vmem>>, %arg6: memref<4x512xf32, #tpu.memory_space<vmem>>) attributes {dimension_semantics = [#tpu.dimension_semantics<parallel>], iteration_bounds = array<i64: 1>, scalar_prefetch = 0 : i64, scratch_operands = 0 : i64, tpu.core_type = #tpu.core_type<tc>, window_params = [{transform_indices = @transform_0, window_bounds = array<i64: 3, 512>}, {pipeline_mode = #tpu.pipeline_mode<synchronous>, transform_indices = @transform_1, window_bounds = array<i64: 32, 3>}, {pipeline_mode = #tpu.pipeline_mode<synchronous>, transform_indices = @transform_2, window_bounds = array<i64: 32, 1>}, {pipeline_mode = #tpu.pipeline_mode<synchronous>, transform_indices = @transform_3, window_bounds = array<i64: 4, 32>}, {pipeline_mode = #tpu.pipeline_mode<synchronous>, transform_indices = @transform_4, window_bounds = array<i64: 4, 1>}, {transform_indices = @transform_5, window_bounds = array<i64: 4, 512>}]} {
    %c0 = arith.constant 0 : index
    %c0_0 = arith.constant 0 : index
    %0 = vector.load %arg2[%c0, %c0_0] : memref<32x3xf32, #tpu.memory_space<vmem>>, vector<32x3xf32>
    %c0_1 = arith.constant 0 : index
    %c0_2 = arith.constant 0 : index
    %1 = vector.load %arg3[%c0_1, %c0_2] : memref<32x1xf32, #tpu.memory_space<vmem>>, vector<32x1xf32>
    %c0_3 = arith.constant 0 : index
    %c0_4 = arith.constant 0 : index
    %2 = vector.load %arg4[%c0_3, %c0_4] : memref<4x32xf32, #tpu.memory_space<vmem>>, vector<4x32xf32>
    %c0_5 = arith.constant 0 : index
    %c0_6 = arith.constant 0 : index
    %3 = vector.load %arg5[%c0_5, %c0_6] : memref<4x1xf32, #tpu.memory_space<vmem>>, vector<4x1xf32>
    %c0_i32 = arith.constant 0 : i32
    %c512_i32 = arith.constant 512 : i32
    %4 = arith.muli %c0_i32, %c512_i32 : i32
    %5 = tpu.assume_multiple %4, 512 : i32
    %c0_7 = arith.constant 0 : index
    %6 = arith.index_cast %5 : i32 to index
    %7 = vector.load %arg1[%c0_7, %6] : memref<3x512xf32, #tpu.memory_space<vmem>>, vector<3x512xf32>
    %cst = arith.constant dense<0.000000e+00> : vector<32x512xf32>
    %8 = tpu.matmul %0, %7, %cst {dimension_numbers = #tpu.dot_dimension_numbers<[1], [0], [0], [1], [0, 0, 1, 1], [], []>} : vector<32x3xf32>, vector<3x512xf32>, vector<32x512xf32> -> vector<32x512xf32>
    %9 = vector.broadcast %1 : vector<32x1xf32> to vector<32x512xf32>
    %10 = arith.addf %8, %9 : vector<32x512xf32>
    %11 = math.exp %10 : vector<32x512xf32>
    %cst_8 = arith.constant 0.000000e+00 : f32
    %12 = vector.broadcast %cst_8 : f32 to vector<32x512xf32>
    %13 = arith.cmpf ogt, %10, %12 : vector<32x512xf32>
    %cst_9 = arith.constant 1.000000e+00 : f32
    %14 = vector.broadcast %cst_9 : f32 to vector<32x512xf32>
    %15 = arith.subf %11, %14 : vector<32x512xf32>
    %16 = arith.select %13, %10, %15 : vector<32x512xi1>, vector<32x512xf32>
    %cst_10 = arith.constant dense<0.000000e+00> : vector<4x512xf32>
    %17 = tpu.matmul %2, %16, %cst_10 {dimension_numbers = #tpu.dot_dimension_numbers<[1], [0], [0], [1], [0, 0, 1, 1], [], []>} : vector<4x32xf32>, vector<32x512xf32>, vector<4x512xf32> -> vector<4x512xf32>
    %18 = vector.broadcast %3 : vector<4x1xf32> to vector<4x512xf32>
    %19 = arith.addf %17, %18 : vector<4x512xf32>
    %20 = vector.extract_strided_slice %19 {offsets = [0, 0], sizes = [1, 512], strides = [1, 1]} : vector<4x512xf32> to vector<1x512xf32>
    %21 = vector.extract_strided_slice %19 {offsets = [1, 0], sizes = [1, 512], strides = [1, 1]} : vector<4x512xf32> to vector<1x512xf32>
    %22 = arith.maximumf %20, %21 : vector<1x512xf32>
    %23 = vector.extract_strided_slice %19 {offsets = [2, 0], sizes = [1, 512], strides = [1, 1]} : vector<4x512xf32> to vector<1x512xf32>
    %24 = vector.extract_strided_slice %19 {offsets = [3, 0], sizes = [1, 512], strides = [1, 1]} : vector<4x512xf32> to vector<1x512xf32>
    %25 = arith.maximumf %23, %24 : vector<1x512xf32>
    %26 = arith.maximumf %22, %25 : vector<1x512xf32>
    %27 = vector.broadcast %26 : vector<1x512xf32> to vector<4x512xf32>
    %28 = arith.subf %19, %27 : vector<4x512xf32>
    %29 = math.exp %28 : vector<4x512xf32>
    %30 = vector.extract_strided_slice %29 {offsets = [0, 0], sizes = [1, 512], strides = [1, 1]} : vector<4x512xf32> to vector<1x512xf32>
    %31 = vector.extract_strided_slice %29 {offsets = [1, 0], sizes = [1, 512], strides = [1, 1]} : vector<4x512xf32> to vector<1x512xf32>
    %32 = arith.addf %30, %31 : vector<1x512xf32>
    %33 = vector.extract_strided_slice %29 {offsets = [2, 0], sizes = [1, 512], strides = [1, 1]} : vector<4x512xf32> to vector<1x512xf32>
    %34 = vector.extract_strided_slice %29 {offsets = [3, 0], sizes = [1, 512], strides = [1, 1]} : vector<4x512xf32> to vector<1x512xf32>
    %35 = arith.addf %33, %34 : vector<1x512xf32>
    %36 = arith.addf %32, %35 : vector<1x512xf32>
    %37 = tpu.reciprocal %36 {approx = true} : vector<1x512xf32> -> vector<1x512xf32>
    %38 = arith.mulf %36, %37 : vector<1x512xf32>
    %cst_11 = arith.constant 2.000000e+00 : f32
    %39 = vector.broadcast %cst_11 : f32 to vector<1x512xf32>
    %40 = arith.subf %39, %38 : vector<1x512xf32>
    %41 = arith.mulf %37, %40 : vector<1x512xf32>
    %42 = vector.broadcast %41 : vector<1x512xf32> to vector<4x512xf32>
    %43 = arith.mulf %29, %42 : vector<4x512xf32>
    %c0_12 = arith.constant 0 : index
    %44 = arith.index_cast %5 : i32 to index
    %45 = vector.load %arg6[%c0_12, %44] : memref<4x512xf32, #tpu.memory_space<vmem>>, vector<4x512xf32>
    tpu.vector_store %arg6[%c0_12, %44], %43 {strides = array<i32>} : memref<4x512xf32, #tpu.memory_space<vmem>>, vector<4x512xf32>,
    %c1_i32 = arith.constant 1 : i32
    return
  }
  func.func @transform_0(%arg0: i32) -> (i32, i32) {
    %c0_i32 = arith.constant 0 : i32
    %c0_i32_0 = arith.constant 0 : i32
    return %c0_i32, %arg0 : i32, i32
  }
  func.func @transform_1(%arg0: i32) -> (i32, i32) {
    %c0_i32 = arith.constant 0 : i32
    %c0_i32_0 = arith.constant 0 : i32
    %c0_i32_1 = arith.constant 0 : i32
    return %c0_i32, %c0_i32_0 : i32, i32
  }
  func.func @transform_2(%arg0: i32) -> (i32, i32) {
    %c0_i32 = arith.constant 0 : i32
    %c0_i32_0 = arith.constant 0 : i32
    %c0_i32_1 = arith.constant 0 : i32
    return %c0_i32, %c0_i32_0 : i32, i32
  }
  func.func @transform_3(%arg0: i32) -> (i32, i32) {
    %c0_i32 = arith.constant 0 : i32
    %c0_i32_0 = arith.constant 0 : i32
    %c0_i32_1 = arith.constant 0 : i32
    return %c0_i32, %c0_i32_0 : i32, i32
  }
  func.func @transform_4(%arg0: i32) -> (i32, i32) {
    %c0_i32 = arith.constant 0 : i32
    %c0_i32_0 = arith.constant 0 : i32
    %c0_i32_1 = arith.constant 0 : i32
    return %c0_i32, %c0_i32_0 : i32, i32
  }
  func.func @transform_5(%arg0: i32) -> (i32, i32) {
    %c0_i32 = arith.constant 0 : i32
    %c0_i32_0 = arith.constant 0 : i32
    return %c0_i32, %arg0 : i32, i32
  }
}

</mosaic_0001>

<llo_original>
// kernel: tpu_custom_call.1
$region0: #{tpu_custom_call.1}
  #allocation0 [shape = 'u32[]', space=smem, size = 0x4, offset = 0x4, fixed_abs, tag = 'smem constant byte address 0x4 - core index']
  #allocation1 [shape = 'u32[144,128]{1,0:T(1,128)}', space=vmem, size = 0x12000, scoped, tag = 'internal scratch']
  %s0 = inlined_call_operand.vmem [shape: f32[3,512], index: 0, kind: input, shape index: {}]
  %s1 = inlined_call_operand.vmem [shape: f32[32,3], index: 1, kind: input, shape index: {}]
  %s2 = inlined_call_operand.vmem [shape: f32[32,1], index: 2, kind: input, shape index: {}]
  %s3 = inlined_call_operand.vmem [shape: f32[4,32], index: 3, kind: input, shape index: {}]
  %s4 = inlined_call_operand.vmem [shape: f32[4,1], index: 4, kind: input, shape index: {}]
  %s5 = inlined_call_operand.hbm [shape: f32[4,512], index: 5, kind: output, shape index: {}]
  %s6 = sld [smem:[#allocation0]]
  $region30: #{tpu_custom_call.1} parent=0
    _
  %s8 = ssub.s32 1, %s6
  %s9 = scalar_select 0, %s8, %s6
  $region1: #{tpu_custom_call.1} parent=0
    #allocation2 [shape = 'u8[8192]{0}', space=vmem, size = 0x2000, scoped, tag = 'output window, operand 0, single buffered']
    #allocation3 [shape = 's32[1]{0}', space=sflag, size = 0x4, scoped, tag = 'scoped memory for tpu_custom_call.1']
    %10 = vsyncpa [#allocation3], 0
    // Predicated region
    $region2: #{tpu_custom_call.1} parent=1 // pred_check
      _
    $region3: #{tpu_custom_call.1} parent=1 // pred_check_branch
      %12 = sbr.rel (0) target = $region5
    $region4: #{tpu_custom_call.1} parent=1 // pred_region
      _
    $region5: #{tpu_custom_call.1} parent=1 // pred_fallthru
      _
    // Predicated region
    $region6: #{tpu_custom_call.1} parent=1 // pred_check
      _
    $region7: #{tpu_custom_call.1} parent=1 // pred_check_branch
      %14 = sbr.rel (0) target = $region9
    $region8: #{tpu_custom_call.1} parent=1 // pred_region
      _
    $region9: #{tpu_custom_call.1} parent=1 // pred_fallthru
      _
    // Predicated region
    $region10: #{tpu_custom_call.1} parent=1 // pred_check
      _
    $region11: #{tpu_custom_call.1} parent=1 // pred_check_branch
      %16 = sbr.rel (0) target = $region13
    $region12: #{tpu_custom_call.1} parent=1 // pred_region
      _
    $region13: #{tpu_custom_call.1} parent=1 // pred_fallthru
      _
    // Predicated region
    $region14: #{tpu_custom_call.1} parent=1 // pred_check
      _
    $region15: #{tpu_custom_call.1} parent=1 // pred_check_branch
      %18 = sbr.rel (0) target = $region17
    $region16: #{tpu_custom_call.1} parent=1 // pred_region
      _
    $region17: #{tpu_custom_call.1} parent=1 // pred_fallthru
      _
    // Predicated region
    $region18: #{tpu_custom_call.1} parent=1 // pred_check
      _
    $region19: #{tpu_custom_call.1} parent=1 // pred_check_branch
      %20 = sbr.rel (0) target = $region21
    $region20: #{tpu_custom_call.1} parent=1 // pred_region
      _
    $region21: #{tpu_custom_call.1} parent=1 // pred_fallthru
      _
    %v21 = vld [vmem:[%s1] sm:$0xff]
    %v22 = vld [vmem:[%s1 + $0x8] sm:$0xff]
    %v23 = vld [vmem:[%s1 + $0x10] sm:$0xff]
    %v24 = vld [vmem:[%s1 + $0x18] sm:$0xff]
    %v25 = vld [vmem:[%s2] sm:$0xff]
    %v26 = vld [vmem:[%s2 + $0x8] sm:$0xff]
    %v27 = vld [vmem:[%s2 + $0x10] sm:$0xff]
    %v28 = vld [vmem:[%s2 + $0x18] sm:$0xff]
    %v29 = vld [vmem:[%s3] sm:$0xf]
    %v30 = vld [vmem:[%s4] sm:$0xf]
    %v31 = vld [vmem:[%s0] sm:$0x77]
    %v32 = vld [vmem:[%s0 + $0x8] sm:$0x77]
    %34 = vset.pattern.permute.xlu0 0
    %35 = vperm.xlu0 %34, %v25
    %v36 = vpop.permute.xlu0 %35
    %39 = vset.pattern.permute.xlu0 0
    %40 = vperm.xlu0 %39, %v26
    %v41 = vpop.permute.xlu0 %40
    %44 = vset.pattern.permute.xlu0 0
    %45 = vperm.xlu0 %44, %v27
    %v46 = vpop.permute.xlu0 %45
    %49 = vset.pattern.permute.xlu0 0
    %50 = vperm.xlu0 %49, %v28
    %v51 = vpop.permute.xlu0 %50
    %v55 = vcombine.high %v31, %v31
    %v56 = vcombine.high %v32, %v32
    %vm57 = vcmask 23552
    %v59 = vsel %vm57, %v21, 0
    %v62 = vsel %vm57, %v22, 0
    %v65 = vsel %vm57, %v23, 0
    %v68 = vsel %vm57, %v24, 0
    %vm70 = vcmask 1042432
    %v71 = vsel %vm70, %v31, 0
    %v73 = vsel %vm70, %v55, 0
    %v75 = vsel %vm70, %v32, 0
    %v77 = vsel %vm70, %v56, 0
    %79 = vmatprep.subr.mxu0 0.0
    %80 = vmatpush1.msra.mxu0 0.0
    %81 = vmatprep.subr.mxu0 0.0
    %82 = vmatpush1.msra.mxu0 0.0
    %83 = vmatprep.subr.mxu0 0.0
    %84 = vmatpush1.msra.mxu0 0.0
    %85 = vmatprep.subr.mxu0 0.0
    %86 = vmatpush1.msra.mxu0 0.0
    %87 = vmatprep.subr.mxu0 0.0
    %88 = vmatpush1.msra.mxu0 0.0
    %89 = vmatprep.subr.mxu0 0.0
    %90 = vmatpush1.msra.mxu0 0.0
    %91 = vmatprep.subr.mxu0 0.0
    %92 = vmatpush1.msra.mxu0 0.0
    %93 = vmatprep.subr.mxu0 0.0
    %94 = vmatpush1.msra.mxu0 0.0
    %95 = vmatprep.subr.mxu0 0.0
    %96 = vmatpush1.msra.mxu0 0.0
    %97 = vmatprep.subr.mxu0 0.0
    %98 = vmatpush1.msra.mxu0 0.0
    %99 = vmatprep.subr.mxu0 0.0
    %100 = vmatpush1.msra.mxu0 0.0
    %101 = vmatprep.subr.mxu0 0.0
    %102 = vmatpush1.msra.mxu0 0.0
    %103 = vmatprep.subr.mxu0 0.0
    %104 = vmatpush1.msra.mxu0 0.0
    %105 = vmatprep.subr.mxu0 0.0
    %106 = vmatpush1.msra.mxu0 0.0
    %107 = vmatprep.subr.mxu0 0.0
    %108 = vmatpush1.msra.mxu0 0.0
    %109 = vmatprep.subr.mxu0 %v73
    %110 = vmatpush1.msra.mxu0 %v71
    %111 = vmatprep.subr.mxu0 0.0
    %112 = vmatpush2.msra.mxu0 0.0
    %113 = vmatprep.subr.mxu0 0.0
    %114 = vmatpush2.msra.mxu0 0.0
    %115 = vmatprep.subr.mxu0 0.0
    %116 = vmatpush2.msra.mxu0 0.0
    %117 = vmatprep.subr.mxu0 0.0
    %118 = vmatpush2.msra.mxu0 0.0
    %119 = vmatprep.subr.mxu0 0.0
    %120 = vmatpush2.msra.mxu0 0.0
    %121 = vmatprep.subr.mxu0 0.0
    %122 = vmatpush2.msra.mxu0 0.0
    %123 = vmatprep.subr.mxu0 0.0
    %124 = vmatpush2.msra.mxu0 0.0
    %125 = vmatprep.subr.mxu0 0.0
    %126 = vmatpush2.msra.mxu0 0.0
    %127 = vmatprep.subr.mxu0 0.0
    %128 = vmatpush2.msra.mxu0 0.0
    %129 = vmatprep.subr.mxu0 0.0
    %130 = vmatpush2.msra.mxu0 0.0
    %131 = vmatprep.subr.mxu0 0.0
    %132 = vmatpush2.msra.mxu0 0.0
    %133 = vmatprep.subr.mxu0 0.0
    %134 = vmatpush2.msra.mxu0 0.0
    %135 = vmatprep.subr.mxu0 0.0
    %136 = vmatpush2.msra.mxu0 0.0
    %137 = vmatprep.subr.mxu0 0.0
    %138 = vmatpush2.msra.mxu0 0.0
    %139 = vmatprep.subr.mxu0 0.0
    %140 = vmatpush2.msra.mxu0 0.0
    %141 = vmatprep.subr.mxu0 0.0
    %142 = vmatpush2.msra.mxu0 0.0
    %143 = vmatprep.mubr.f32.mxu0 0.0
    %144 = vmatmul.mubr.f32.gmra.mxu0 %v59
    %v145 = vpop.f32.mrf.mxu0
    %v146 = vadd.f32 %v36, %v145
    %v147 = vpop.f32.mrf.mxu0
    %v148 = vadd.f32 %v36, %v147
    %149 = vmatprep.mubr.f32.mxu0 0.0
    %150 = vmatmul.mubr.f32.gmra.mxu0 %v62
    %v151 = vpop.f32.mrf.mxu0
    %v152 = vadd.f32 %v41, %v151
    %v153 = vpop.f32.mrf.mxu0
    %v154 = vadd.f32 %v41, %v153
    %155 = vmatprep.mubr.f32.mxu0 0.0
    %156 = vmatmul.mubr.f32.gmra.mxu0 %v65
    %v157 = vpop.f32.mrf.mxu0
    %v158 = vadd.f32 %v46, %v157
    %v159 = vpop.f32.mrf.mxu0
    %v160 = vadd.f32 %v46, %v159
    %161 = vmatprep.mubr.f32.mxu0 0.0
    %162 = vmatmul.mubr.f32.gmra.mxu0 %v68
    %v163 = vpop.f32.mrf.mxu0
    %v164 = vadd.f32 %v51, %v163
    %v165 = vpop.f32.mrf.mxu0
    %v166 = vadd.f32 %v51, %v165
    %167 = vdwg.mxu0
    %168 = vmatprep.subr.mxu0 0.0
    %169 = vmatpush1.msra.mxu0 0.0
    %170 = vmatprep.subr.mxu0 0.0
    %171 = vmatpush1.msra.mxu0 0.0
    %172 = vmatprep.subr.mxu0 0.0
    %173 = vmatpush1.msra.mxu0 0.0
    %174 = vmatprep.subr.mxu0 0.0
    %175 = vmatpush1.msra.mxu0 0.0
    %176 = vmatprep.subr.mxu0 0.0
    %177 = vmatpush1.msra.mxu0 0.0
    %178 = vmatprep.subr.mxu0 0.0
    %179 = vmatpush1.msra.mxu0 0.0
    %180 = vmatprep.subr.mxu0 0.0
    %181 = vmatpush1.msra.mxu0 0.0
    %182 = vmatprep.subr.mxu0 0.0
    %183 = vmatpush1.msra.mxu0 0.0
    %184 = vmatprep.subr.mxu0 0.0
    %185 = vmatpush1.msra.mxu0 0.0
    %186 = vmatprep.subr.mxu0 0.0
    %187 = vmatpush1.msra.mxu0 0.0
    %188 = vmatprep.subr.mxu0 0.0
    %189 = vmatpush1.msra.mxu0 0.0
    %190 = vmatprep.subr.mxu0 0.0
    %191 = vmatpush1.msra.mxu0 0.0
    %192 = vmatprep.subr.mxu0 0.0
    %193 = vmatpush1.msra.mxu0 0.0
    %194 = vmatprep.subr.mxu0 0.0
    %195 = vmatpush1.msra.mxu0 0.0
    %196 = vmatprep.subr.mxu0 0.0
    %197 = vmatpush1.msra.mxu0 0.0
    %198 = vmatprep.subr.mxu0 %v77
    %199 = vmatpush1.msra.mxu0 %v75
    %200 = vmatprep.subr.mxu0 0.0
    %201 = vmatpush2.msra.mxu0 0.0
    %202 = vmatprep.subr.mxu0 0.0
    %203 = vmatpush2.msra.mxu0 0.0
    %204 = vmatprep.subr.mxu0 0.0
    %205 = vmatpush2.msra.mxu0 0.0
    %206 = vmatprep.subr.mxu0 0.0
    %207 = vmatpush2.msra.mxu0 0.0
    %208 = vmatprep.subr.mxu0 0.0
    %209 = vmatpush2.msra.mxu0 0.0
    %210 = vmatprep.subr.mxu0 0.0
    %211 = vmatpush2.msra.mxu0 0.0
    %212 = vmatprep.subr.mxu0 0.0
    %213 = vmatpush2.msra.mxu0 0.0
    %214 = vmatprep.subr.mxu0 0.0
    %215 = vmatpush2.msra.mxu0 0.0
    %216 = vmatprep.subr.mxu0 0.0
    %217 = vmatpush2.msra.mxu0 0.0
    %218 = vmatprep.subr.mxu0 0.0
    %219 = vmatpush2.msra.mxu0 0.0
    %220 = vmatprep.subr.mxu0 0.0
    %221 = vmatpush2.msra.mxu0 0.0
    %222 = vmatprep.subr.mxu0 0.0
    %223 = vmatpush2.msra.mxu0 0.0
    %224 = vmatprep.subr.mxu0 0.0
    %225 = vmatpush2.msra.mxu0 0.0
    %226 = vmatprep.subr.mxu0 0.0
    %227 = vmatpush2.msra.mxu0 0.0
    %228 = vmatprep.subr.mxu0 0.0
    %229 = vmatpush2.msra.mxu0 0.0
    %230 = vmatprep.subr.mxu0 0.0
    %231 = vmatpush2.msra.mxu0 0.0
    %232 = vmatprep.mubr.f32.mxu0 0.0
    %233 = vmatmul.mubr.f32.gmra.mxu0 %v59
    %v234 = vpop.f32.mrf.mxu0
    %v235 = vadd.f32 %v36, %v234
    %v236 = vpop.f32.mrf.mxu0
    %v237 = vadd.f32 %v36, %v236
    %238 = vmatprep.mubr.f32.mxu0 0.0
    %239 = vmatmul.mubr.f32.gmra.mxu0 %v62
    %v240 = vpop.f32.mrf.mxu0
    %v241 = vadd.f32 %v41, %v240
    %v242 = vpop.f32.mrf.mxu0
    %v243 = vadd.f32 %v41, %v242
    %244 = vmatprep.mubr.f32.mxu0 0.0
    %245 = vmatmul.mubr.f32.gmra.mxu0 %v65
    %v246 = vpop.f32.mrf.mxu0
    %v247 = vadd.f32 %v46, %v246
    %v248 = vpop.f32.mrf.mxu0
    %v249 = vadd.f32 %v46, %v248
    %250 = vmatprep.mubr.f32.mxu0 0.0
    %251 = vmatmul.mubr.f32.gmra.mxu0 %v68
    %v252 = vpop.f32.mrf.mxu0
    %v253 = vadd.f32 %v51, %v252
    %v254 = vpop.f32.mrf.mxu0
    %v255 = vadd.f32 %v51, %v254
    %256 = vdwg.mxu0
    %v257 = vmul.f32 %v146, 1.442695
    %v258 = vpow.pop %v257
    %v259 = vmul.f32 %v148, 1.442695
    %v260 = vpow.pop %v259
    %v261 = vmul.f32 %v235, 1.442695
    %v262 = vpow.pop %v261
    %v263 = vmul.f32 %v237, 1.442695
    %v264 = vpow.pop %v263
    %v265 = vmul.f32 %v152, 1.442695
    %v266 = vpow.pop %v265
    %v267 = vmul.f32 %v154, 1.442695
    %v268 = vpow.pop %v267
    %v269 = vmul.f32 %v241, 1.442695
    %v270 = vpow.pop %v269
    %v271 = vmul.f32 %v243, 1.442695
    %v272 = vpow.pop %v271
    %v273 = vmul.f32 %v158, 1.442695
    %v274 = vpow.pop %v273
    %v275 = vmul.f32 %v160, 1.442695
    %v276 = vpow.pop %v275
    %v277 = vmul.f32 %v247, 1.442695
    %v278 = vpow.pop %v277
    %v279 = vmul.f32 %v249, 1.442695
    %v280 = vpow.pop %v279
    %v281 = vmul.f32 %v164, 1.442695
    %v282 = vpow.pop %v281
    %v283 = vmul.f32 %v166, 1.442695
    %v284 = vpow.pop %v283
    %v285 = vmul.f32 %v253, 1.442695
    %v286 = vpow.pop %v285
    %v287 = vmul.f32 %v255, 1.442695
    %v288 = vpow.pop %v287
    %vm289 = vcmp.gt.f32.partialorder %v146, 0.0
    %vm290 = vcmp.gt.f32.partialorder %v148, 0.0
    %vm291 = vcmp.gt.f32.partialorder %v235, 0.0
    %vm292 = vcmp.gt.f32.partialorder %v237, 0.0
    %vm293 = vcmp.gt.f32.partialorder %v152, 0.0
    %vm294 = vcmp.gt.f32.partialorder %v154, 0.0
    %vm295 = vcmp.gt.f32.partialorder %v241, 0.0
    %vm296 = vcmp.gt.f32.partialorder %v243, 0.0
    %vm297 = vcmp.gt.f32.partialorder %v158, 0.0
    %vm298 = vcmp.gt.f32.partialorder %v160, 0.0
    %vm299 = vcmp.gt.f32.partialorder %v247, 0.0
    %vm300 = vcmp.gt.f32.partialorder %v249, 0.0
    %vm301 = vcmp.gt.f32.partialorder %v164, 0.0
    %vm302 = vcmp.gt.f32.partialorder %v166, 0.0
    %vm303 = vcmp.gt.f32.partialorder %v253, 0.0
    %vm304 = vcmp.gt.f32.partialorder %v255, 0.0
    %v305 = vsub.f32 %v258, 1.0
    %v306 = vsub.f32 %v260, 1.0
    %v307 = vsub.f32 %v262, 1.0
    %v308 = vsub.f32 %v264, 1.0
    %v309 = vsub.f32 %v266, 1.0
    %v310 = vsub.f32 %v268, 1.0
    %v311 = vsub.f32 %v270, 1.0
    %v312 = vsub.f32 %v272, 1.0
    %v313 = vsub.f32 %v274, 1.0
    %v314 = vsub.f32 %v276, 1.0
    %v315 = vsub.f32 %v278, 1.0
    %v316 = vsub.f32 %v280, 1.0
    %v317 = vsub.f32 %v282, 1.0
    %v318 = vsub.f32 %v284, 1.0
    %v319 = vsub.f32 %v286, 1.0
    %v320 = vsub.f32 %v288, 1.0
    %v321 = vsel %vm289, %v146, %v305
    %v322 = vsel %vm290, %v148, %v306
    %v323 = vsel %vm291, %v235, %v307
    %v324 = vsel %vm292, %v237, %v308
    %v325 = vsel %vm293, %v152, %v309
    %v326 = vsel %vm294, %v154, %v310
    %v327 = vsel %vm295, %v241, %v311
    %v328 = vsel %vm296, %v243, %v312
    %v329 = vsel %vm297, %v158, %v313
    %v330 = vsel %vm298, %v160, %v314
    %v331 = vsel %vm299, %v247, %v315
    %v332 = vsel %vm300, %v249, %v316
    %v333 = vsel %vm301, %v164, %v317
    %v334 = vsel %vm302, %v166, %v318
    %v335 = vsel %vm303, %v253, %v319
    %v336 = vsel %vm304, %v255, %v320
    %338 = vset.pattern.permute.xlu0 0
    %339 = vperm.xlu0 %338, %v30
    %v340 = vpop.permute.xlu0 %339
    %vm342 = vcmask 261120
    %v344 = vsel %vm342, %v29, 0
    %346 = vmatprep.subr.mxu0 0.0
    %347 = vmatpush1.msra.mxu0 0.0
    %348 = vmatprep.subr.mxu0 0.0
    %349 = vmatpush1.msra.mxu0 0.0
    %350 = vmatprep.subr.mxu0 0.0
    %351 = vmatpush1.msra.mxu0 0.0
    %352 = vmatprep.subr.mxu0 0.0
    %353 = vmatpush1.msra.mxu0 0.0
    %354 = vmatprep.subr.mxu0 0.0
    %355 = vmatpush1.msra.mxu0 0.0
    %356 = vmatprep.subr.mxu0 0.0
    %357 = vmatpush1.msra.mxu0 0.0
    %358 = vmatprep.subr.mxu0 0.0
    %359 = vmatpush1.msra.mxu0 0.0
    %360 = vmatprep.subr.mxu0 0.0
    %361 = vmatpush1.msra.mxu0 0.0
    %362 = vmatprep.subr.mxu0 0.0
    %363 = vmatpush1.msra.mxu0 0.0
    %364 = vmatprep.subr.mxu0 0.0
    %365 = vmatpush1.msra.mxu0 0.0
    %366 = vmatprep.subr.mxu0 0.0
    %367 = vmatpush1.msra.mxu0 0.0
    %368 = vmatprep.subr.mxu0 0.0
    %369 = vmatpush1.msra.mxu0 0.0
    %370 = vmatprep.subr.mxu0 %v334
    %371 = vmatpush1.msra.mxu0 %v333
    %372 = vmatprep.subr.mxu0 %v330
    %373 = vmatpush1.msra.mxu0 %v329
    %374 = vmatprep.subr.mxu0 %v326
    %375 = vmatpush1.msra.mxu0 %v325
    %376 = vmatprep.subr.mxu0 %v322
    %377 = vmatpush1.msra.mxu0 %v321
    %378 = vmatprep.subr.mxu0 0.0
    %379 = vmatpush2.msra.mxu0 0.0
    %380 = vmatprep.subr.mxu0 0.0
    %381 = vmatpush2.msra.mxu0 0.0
    %382 = vmatprep.subr.mxu0 0.0
    %383 = vmatpush2.msra.mxu0 0.0
    %384 = vmatprep.subr.mxu0 0.0
    %385 = vmatpush2.msra.mxu0 0.0
    %386 = vmatprep.subr.mxu0 0.0
    %387 = vmatpush2.msra.mxu0 0.0
    %388 = vmatprep.subr.mxu0 0.0
    %389 = vmatpush2.msra.mxu0 0.0
    %390 = vmatprep.subr.mxu0 0.0
    %391 = vmatpush2.msra.mxu0 0.0
    %392 = vmatprep.subr.mxu0 0.0
    %393 = vmatpush2.msra.mxu0 0.0
    %394 = vmatprep.subr.mxu0 0.0
    %395 = vmatpush2.msra.mxu0 0.0
    %396 = vmatprep.subr.mxu0 0.0
    %397 = vmatpush2.msra.mxu0 0.0
    %398 = vmatprep.subr.mxu0 0.0
    %399 = vmatpush2.msra.mxu0 0.0
    %400 = vmatprep.subr.mxu0 0.0
    %401 = vmatpush2.msra.mxu0 0.0
    %402 = vmatprep.subr.mxu0 0.0
    %403 = vmatpush2.msra.mxu0 0.0
    %404 = vmatprep.subr.mxu0 0.0
    %405 = vmatpush2.msra.mxu0 0.0
    %406 = vmatprep.subr.mxu0 0.0
    %407 = vmatpush2.msra.mxu0 0.0
    %408 = vmatprep.subr.mxu0 0.0
    %409 = vmatpush2.msra.mxu0 0.0
    %410 = vmatprep.mubr.f32.mxu0 0.0
    %411 = vmatmul.mubr.f32.gmra.mxu0 %v344
    %v412 = vpop.f32.mrf.mxu0
    %v413 = vadd.f32 %v340, %v412
    %v414 = vpop.f32.mrf.mxu0
    %v415 = vadd.f32 %v340, %v414
    %416 = vdwg.mxu0
    %417 = vmatprep.subr.mxu0 0.0
    %418 = vmatpush1.msra.mxu0 0.0
    %419 = vmatprep.subr.mxu0 0.0
    %420 = vmatpush1.msra.mxu0 0.0
    %421 = vmatprep.subr.mxu0 0.0
    %422 = vmatpush1.msra.mxu0 0.0
    %423 = vmatprep.subr.mxu0 0.0
    %424 = vmatpush1.msra.mxu0 0.0
    %425 = vmatprep.subr.mxu0 0.0
    %426 = vmatpush1.msra.mxu0 0.0
    %427 = vmatprep.subr.mxu0 0.0
    %428 = vmatpush1.msra.mxu0 0.0
    %429 = vmatprep.subr.mxu0 0.0
    %430 = vmatpush1.msra.mxu0 0.0
    %431 = vmatprep.subr.mxu0 0.0
    %432 = vmatpush1.msra.mxu0 0.0
    %433 = vmatprep.subr.mxu0 0.0
    %434 = vmatpush1.msra.mxu0 0.0
    %435 = vmatprep.subr.mxu0 0.0
    %436 = vmatpush1.msra.mxu0 0.0
    %437 = vmatprep.subr.mxu0 0.0
    %438 = vmatpush1.msra.mxu0 0.0
    %439 = vmatprep.subr.mxu0 0.0
    %440 = vmatpush1.msra.mxu0 0.0
    %441 = vmatprep.subr.mxu0 %v336
    %442 = vmatpush1.msra.mxu0 %v335
    %443 = vmatprep.subr.mxu0 %v332
    %444 = vmatpush1.msra.mxu0 %v331
    %445 = vmatprep.subr.mxu0 %v328
    %446 = vmatpush1.msra.mxu0 %v327
    %447 = vmatprep.subr.mxu0 %v324
    %448 = vmatpush1.msra.mxu0 %v323
    %449 = vmatprep.subr.mxu0 0.0
    %450 = vmatpush2.msra.mxu0 0.0
    %451 = vmatprep.subr.mxu0 0.0
    %452 = vmatpush2.msra.mxu0 0.0
    %453 = vmatprep.subr.mxu0 0.0
    %454 = vmatpush2.msra.mxu0 0.0
    %455 = vmatprep.subr.mxu0 0.0
    %456 = vmatpush2.msra.mxu0 0.0
    %457 = vmatprep.subr.mxu0 0.0
    %458 = vmatpush2.msra.mxu0 0.0
    %459 = vmatprep.subr.mxu0 0.0
    %460 = vmatpush2.msra.mxu0 0.0
    %461 = vmatprep.subr.mxu0 0.0
    %462 = vmatpush2.msra.mxu0 0.0
    %463 = vmatprep.subr.mxu0 0.0
    %464 = vmatpush2.msra.mxu0 0.0
    %465 = vmatprep.subr.mxu0 0.0
    %466 = vmatpush2.msra.mxu0 0.0
    %467 = vmatprep.subr.mxu0 0.0
    %468 = vmatpush2.msra.mxu0 0.0
    %469 = vmatprep.subr.mxu0 0.0
    %470 = vmatpush2.msra.mxu0 0.0
    %471 = vmatprep.subr.mxu0 0.0
    %472 = vmatpush2.msra.mxu0 0.0
    %473 = vmatprep.subr.mxu0 0.0
    %474 = vmatpush2.msra.mxu0 0.0
    %475 = vmatprep.subr.mxu0 0.0
    %476 = vmatpush2.msra.mxu0 0.0
    %477 = vmatprep.subr.mxu0 0.0
    %478 = vmatpush2.msra.mxu0 0.0
    %479 = vmatprep.subr.mxu0 0.0
    %480 = vmatpush2.msra.mxu0 0.0
    %481 = vmatprep.mubr.f32.mxu0 0.0
    %482 = vmatmul.mubr.f32.gmra.mxu0 %v344
    %v483 = vpop.f32.mrf.mxu0
    %v484 = vadd.f32 %v340, %v483
    %v485 = vpop.f32.mrf.mxu0
    %v486 = vadd.f32 %v340, %v485
    %487 = vdwg.mxu0
    %v492 = vrot.slane %v413, 1
    %v493 = vrot.slane %v415, 1
    %v494 = vrot.slane %v484, 1
    %v495 = vrot.slane %v486, 1
    %v500 = vmax.f32 %v413, %v492
    %v501 = vmax.f32 %v415, %v493
    %v502 = vmax.f32 %v484, %v494
    %v503 = vmax.f32 %v486, %v495
    %v508 = vrot.slane %v500, 2
    %v509 = vrot.slane %v501, 2
    %v510 = vrot.slane %v502, 2
    %v511 = vrot.slane %v503, 2
    %v516 = vmax.f32 %v500, %v508
    %v517 = vmax.f32 %v501, %v509
    %v518 = vmax.f32 %v502, %v510
    %v519 = vmax.f32 %v503, %v511
    %v520 = vlaneseq
    %v521 = vshrl.u32 %v520, 7
    %v522 = vsub.s32 0, %v521
    %v523 = vrot.slane %v516, %v522
    %v524 = vlaneseq
    %v525 = vshrl.u32 %v524, 7
    %v526 = vsub.s32 0, %v525
    %v527 = vrot.slane %v517, %v526
    %v528 = vlaneseq
    %v529 = vshrl.u32 %v528, 7
    %v530 = vsub.s32 0, %v529
    %v531 = vrot.slane %v518, %v530
    %v532 = vlaneseq
    %v533 = vshrl.u32 %v532, 7
    %v534 = vsub.s32 0, %v533
    %v535 = vrot.slane %v519, %v534
    %v536 = vsub.f32 %v413, %v523
    %v537 = vsub.f32 %v415, %v527
    %v538 = vsub.f32 %v484, %v531
    %v539 = vsub.f32 %v486, %v535
    %v540 = vmul.f32 %v536, 1.442695
    %v541 = vpow.pop %v540
    %v542 = vmul.f32 %v537, 1.442695
    %v543 = vpow.pop %v542
    %v544 = vmul.f32 %v538, 1.442695
    %v545 = vpow.pop %v544
    %v546 = vmul.f32 %v539, 1.442695
    %v547 = vpow.pop %v546
    %v552 = vrot.slane %v541, 1
    %v553 = vrot.slane %v543, 1
    %v554 = vrot.slane %v545, 1
    %v555 = vrot.slane %v547, 1
    %v560 = vadd.f32 %v541, %v552
    %v561 = vadd.f32 %v543, %v553
    %v562 = vadd.f32 %v545, %v554
    %v563 = vadd.f32 %v547, %v555
    %v568 = vrot.slane %v560, 2
    %v569 = vrot.slane %v561, 2
    %v570 = vrot.slane %v562, 2
    %v571 = vrot.slane %v563, 2
    %v576 = vadd.f32 %v560, %v568
    %v577 = vadd.f32 %v561, %v569
    %v578 = vadd.f32 %v562, %v570
    %v579 = vadd.f32 %v563, %v571
    %v580 = vrcp.pop %v576
    %v581 = vrcp.pop %v577
    %v582 = vrcp.pop %v578
    %v583 = vrcp.pop %v579
    %v584 = vmul.f32 %v576, %v580
    %v585 = vmul.f32 %v577, %v581
    %v586 = vmul.f32 %v578, %v582
    %v587 = vmul.f32 %v579, %v583
    %v588 = vsub.f32 2.0, %v584
    %v589 = vsub.f32 2.0, %v585
    %v590 = vsub.f32 2.0, %v586
    %v591 = vsub.f32 2.0, %v587
    %v592 = vmul.f32 %v580, %v588
    %v593 = vmul.f32 %v581, %v589
    %v594 = vmul.f32 %v582, %v590
    %v595 = vmul.f32 %v583, %v591
    %v596 = vlaneseq
    %v597 = vshrl.u32 %v596, 7
    %v598 = vsub.s32 0, %v597
    %v599 = vrot.slane %v592, %v598
    %v600 = vlaneseq
    %v601 = vshrl.u32 %v600, 7
    %v602 = vsub.s32 0, %v601
    %v603 = vrot.slane %v593, %v602
    %v604 = vlaneseq
    %v605 = vshrl.u32 %v604, 7
    %v606 = vsub.s32 0, %v605
    %v607 = vrot.slane %v594, %v606
    %v608 = vlaneseq
    %v609 = vshrl.u32 %v608, 7
    %v610 = vsub.s32 0, %v609
    %v611 = vrot.slane %v595, %v610
    %v612 = vmul.f32 %v541, %v599
    %v613 = vmul.f32 %v543, %v603
    %v614 = vmul.f32 %v545, %v607
    %v615 = vmul.f32 %v547, %v611
    %v620 = vcombine.low %v612, %v613
    %v621 = vcombine.low %v614, %v615
    %624 = vst [vmem:[#allocation2] sm:$0xff] %v620
    %625 = vst [vmem:[#allocation2 + $0x8] sm:$0xff] %v621
    // Predicated region
    $region22: #{tpu_custom_call.1} parent=1 // pred_check
      _
    $region23: #{tpu_custom_call.1} parent=1 // pred_check_branch
      %627 = sbr.rel (0) target = $region25
    $region24: #{tpu_custom_call.1} parent=1 // pred_region
      %s629 = ssub.s32 256, 256
      %630 = vsyncadd [#allocation3], %s629
      %s632 = sshll.u32 [#allocation2], 4
      %s633 = int_to_ptr.vmem [resolvable:$true] %s632
      %635 = dma.vmem_to_hbm [thread:$0]  %s633, 256, %s5, [#allocation3]
    $region25: #{tpu_custom_call.1} parent=1 // pred_fallthru
      _
    // Predicated region
    $region26: #{tpu_custom_call.1} parent=1 // pred_check
      _
    $region27: #{tpu_custom_call.1} parent=1 // pred_check_branch
      %637 = sbr.rel (0) target = $region29
    $region28: #{tpu_custom_call.1} parent=1 // pred_region
      %638 = dma.done [#allocation3], 256
    $region29: #{tpu_custom_call.1} parent=1 // pred_fallthru
      _
    %639 = vsyncpa [#allocation3], 1

</llo_original>
